<compile_context>
chip_gen: v6e
topology: v6e:2x2x1
jax: 0.10.0
libtpu: 0.0.40
codegen_flags: <defaults>
</compile_context>

<pallas_src>
import functools

import jax
import jax.numpy as jnp
from jax.experimental import pallas as pl
from jax.experimental.pallas import tpu as pltpu


def _ensemble_kernel(x_ref, wt_ref, boxes_ref, confs_ref, *, nc1, nc2):
    """One batch element per grid step, anchors on the lane axis.

    x_ref     : [1, C, N]             bf16 input features (channels on sublanes)
    wt_ref    : [8 + nc1 + nc2, C]    bf16 fused head weights, rows ordered
                                      [b1(4) | b2(4) | c1(nc1) | c2(nc2)]
    boxes_ref : [1, 2, 4, N]          per-model boxes (index 0 = model 1)
    confs_ref : [1, 2, nc1+nc2, N]    per-model zero-padded class confidences
    """
    # Single fused MXU matmul: [K, C] @ [C, N] -> [K, N], f32 accumulation.
    out = jnp.dot(wt_ref[...], x_ref[0], preferred_element_type=jnp.float32)

    # --- boxes: full-lane stores, one per model ---
    boxes_ref[0, 0] = out[0:4, :]          # model 1 boxes  [4, N]
    boxes_ref[0, 1] = out[4:8, :]          # model 2 boxes  [4, N]

    # --- class confidences: one sigmoid over all class rows (EUP, f32) ---
    cls = jax.nn.sigmoid(out[8:, :])       # [nc1 + nc2, N]

    # merge_outputs padding: off-diagonal class blocks are exactly zero.
    n = cls.shape[-1]
    confs_ref[0, 0, :nc1, :] = cls[:nc1, :]                             # c1
    confs_ref[0, 0, nc1:, :] = jnp.zeros((nc2, n), dtype=jnp.float32)   # pad
    confs_ref[0, 1, :nc1, :] = jnp.zeros((nc1, n), dtype=jnp.float32)   # pad
    confs_ref[0, 1, nc1:, :] = cls[nc1:, :]                             # c2


def ensemble_forward(x_nchw, wb1, wc1, wb2, wc2):
    """x_nchw: [B, C, H, W] float32. Returns [boxes, confs] like merge_outputs."""
    B, C, H, W = x_nchw.shape
    N = H * W
    nc1 = wc1.shape[1]
    nc2 = wc2.shape[1]
    nc_total = nc1 + nc2
    K = 8 + nc_total  # fused head rows: b1(4) + b2(4) + c1(nc1) + c2(nc2)

    # NCHW -> [B, C, N] is a pure reshape (no transpose / HBM round trip).
    x = x_nchw.reshape(B, C, N).astype(jnp.bfloat16)

    # Fuse the four heads into one weight matrix, pre-transposed to [K, C].
    wt = jnp.concatenate([wb1, wb2, wc1, wc2], axis=1).T.astype(jnp.bfloat16)

    kernel = functools.partial(_ensemble_kernel, nc1=nc1, nc2=nc2)

    boxes_t, confs_t = pl.pallas_call(
        kernel,
        out_shape=(
            jax.ShapeDtypeStruct((B, 2, 4, N), jnp.float32),
            jax.ShapeDtypeStruct((B, 2, nc_total, N), jnp.float32),
        ),
        grid_spec=pltpu.PrefetchScalarGridSpec(
            num_scalar_prefetch=0,
            grid=(B,),
            in_specs=[
                pl.BlockSpec((1, C, N), lambda b: (b, 0, 0)),
                pl.BlockSpec((K, C), lambda b: (0, 0)),
            ],
            out_specs=[
                pl.BlockSpec((1, 2, 4, N), lambda b: (b, 0, 0, 0)),
                pl.BlockSpec((1, 2, nc_total, N), lambda b: (b, 0, 0, 0)),
            ],
        ),
        compiler_params=pltpu.CompilerParams(
            dimension_semantics=("parallel",)),
    )(x, wt)

    # Back to torch layout in the wrapper (kernel stores stay lane-dense).
    # boxes_t : [B, 2, 4, N] -> [B, 2, N, 4] -> [B, 2N, 1, 4]
    boxes = jnp.transpose(boxes_t, (0, 1, 3, 2)).reshape(B, 2 * N, 1, 4)
    # confs_t : [B, 2, nc_total, N] -> [B, 2, N, nc_total] -> [B, 2N, nc_total]
    confs = jnp.transpose(confs_t, (0, 1, 3, 2)).reshape(B, 2 * N, nc_total)
    return [boxes, confs]


def _reference(x_nchw, wb1, wc1, wb2, wc2):
    """Pure-JAX reference with the same bf16 MXU operands / f32 accumulation."""
    B, C, H, W = x_nchw.shape
    N = H * W
    x = jnp.transpose(x_nchw, (0, 2, 3, 1)).reshape(B, N, C).astype(jnp.bfloat16)
    wb1b, wc1b, wb2b, wc2b = (w.astype(jnp.bfloat16) for w in (wb1, wc1, wb2, wc2))
    b1 = jnp.dot(x, wb1b, preferred_element_type=jnp.float32)
    b2 = jnp.dot(x, wb2b, preferred_element_type=jnp.float32)
    c1 = jax.nn.sigmoid(jnp.dot(x, wc1b, preferred_element_type=jnp.float32))
    c2 = jax.nn.sigmoid(jnp.dot(x, wc2b, preferred_element_type=jnp.float32))
    confs1 = jnp.concatenate([c1, jnp.zeros_like(c2)], axis=2)
    confs2 = jnp.concatenate([jnp.zeros_like(c1), c2], axis=2)
    boxes = jnp.concatenate([b1[:, :, None, :], b2[:, :, None, :]], axis=1)
    confs = jnp.concatenate([confs1, confs2], axis=1)
    return [boxes, confs]


if __name__ == "__main__":
    key = jax.random.PRNGKey(0)
    k_x, k_b1, k_c1, k_b2, k_c2 = jax.random.split(key, 5)

    B, C, H, W = 2, 32, 16, 16     # N = 256 anchors (multiple of 128 -> lane-dense)
    NC1, NC2 = 8, 8                # per-model class counts

    x = jax.random.normal(k_x, (B, C, H, W), dtype=jnp.float32)
    wb1 = jax.random.normal(k_b1, (C, 4), dtype=jnp.float32) * 0.1
    wc1 = jax.random.normal(k_c1, (C, NC1), dtype=jnp.float32) * 0.1
    wb2 = jax.random.normal(k_b2, (C, 4), dtype=jnp.float32) * 0.1
    wc2 = jax.random.normal(k_c2, (C, NC2), dtype=jnp.float32) * 0.1

    boxes, confs = ensemble_forward(x, wb1, wc1, wb2, wc2)
    jax.block_until_ready(boxes)
    jax.block_until_ready(confs)

    ref_boxes, ref_confs = _reference(x, wb1, wc1, wb2, wc2)
    assert boxes.shape == (B, 2 * H * W, 1, 4)
    assert confs.shape == (B, 2 * H * W, NC1 + NC2)
    assert jnp.allclose(boxes, ref_boxes, atol=1e-3, rtol=1e-3)
    assert jnp.allclose(confs, ref_confs, atol=1e-3, rtol=1e-3)

    print("KERNEL_OK")
</pallas_src>

<mosaic_0001>
module attributes {stable_mosaic.version = 11 : i64} {
  func.func @_ensemble_kernel(%arg0: i32, %arg1: memref<1x32x256xbf16, #tpu.memory_space<vmem>>, %arg2: memref<24x32xbf16, #tpu.memory_space<vmem>>, %arg3: memref<1x2x4x256xf32, #tpu.memory_space<vmem>>, %arg4: memref<1x2x16x256xf32, #tpu.memory_space<vmem>>) attributes {dimension_semantics = [#tpu.dimension_semantics<parallel>], iteration_bounds = array<i64: 2>, scalar_prefetch = 0 : i64, scratch_operands = 0 : i64, tpu.core_type = #tpu.core_type<tc>, window_params = [{transform_indices = @transform_0, window_bounds = array<i64: 1, 32, 256>}, {pipeline_mode = #tpu.pipeline_mode<synchronous>, transform_indices = @transform_1, window_bounds = array<i64: 24, 32>}, {transform_indices = @transform_2, window_bounds = array<i64: 1, 2, 4, 256>}, {transform_indices = @transform_3, window_bounds = array<i64: 1, 2, 16, 256>}]} {
    %c0 = arith.constant 0 : index
    %c0_0 = arith.constant 0 : index
    %0 = vector.load %arg2[%c0, %c0_0] : memref<24x32xbf16, #tpu.memory_space<vmem>>, vector<24x32xbf16>
    %c0_1 = arith.constant 0 : index
    %c0_2 = arith.constant 0 : index
    %c0_3 = arith.constant 0 : index
    %1 = vector.load %arg1[%c0_1, %c0_2, %c0_3] : memref<1x32x256xbf16, #tpu.memory_space<vmem>>, vector<1x32x256xbf16>
    %2 = vector.shape_cast %1 : vector<1x32x256xbf16> to vector<32x256xbf16>
    %cst = arith.constant dense<0.000000e+00> : vector<24x256xf32>
    %3 = tpu.matmul %0, %2, %cst {dimension_numbers = #tpu.dot_dimension_numbers<[1], [0], [0], [1], [0, 0, 1, 1], [], []>} : vector<24x32xbf16>, vector<32x256xbf16>, vector<24x256xf32> -> vector<24x256xf32>
    %4 = vector.extract_strided_slice %3 {offsets = [0, 0], sizes = [4, 256], strides = [1, 1]} : vector<24x256xf32> to vector<4x256xf32>
    %c0_4 = arith.constant 0 : index
    %c0_5 = arith.constant 0 : index
    %c0_6 = arith.constant 0 : index
    %c0_7 = arith.constant 0 : index
    %5 = vector.load %arg3[%c0_4, %c0_5, %c0_6, %c0_7] : memref<1x2x4x256xf32, #tpu.memory_space<vmem>>, vector<1x1x4x256xf32>
    %6 = vector.shape_cast %5 : vector<1x1x4x256xf32> to vector<4x256xf32>
    %7 = vector.shape_cast %4 : vector<4x256xf32> to vector<1x1x4x256xf32>
    tpu.vector_store %arg3[%c0_4, %c0_5, %c0_6, %c0_7], %7 {strides = array<i32>} : memref<1x2x4x256xf32, #tpu.memory_space<vmem>>, vector<1x1x4x256xf32>,
    %8 = vector.extract_strided_slice %3 {offsets = [4, 0], sizes = [4, 256], strides = [1, 1]} : vector<24x256xf32> to vector<4x256xf32>
    %c0_8 = arith.constant 0 : index
    %c1 = arith.constant 1 : index
    %c0_9 = arith.constant 0 : index
    %c0_10 = arith.constant 0 : index
    %9 = vector.load %arg3[%c0_8, %c1, %c0_9, %c0_10] : memref<1x2x4x256xf32, #tpu.memory_space<vmem>>, vector<1x1x4x256xf32>
    %10 = vector.shape_cast %9 : vector<1x1x4x256xf32> to vector<4x256xf32>
    %11 = vector.shape_cast %8 : vector<4x256xf32> to vector<1x1x4x256xf32>
    tpu.vector_store %arg3[%c0_8, %c1, %c0_9, %c0_10], %11 {strides = array<i32>} : memref<1x2x4x256xf32, #tpu.memory_space<vmem>>, vector<1x1x4x256xf32>,
    %12 = vector.extract_strided_slice %3 {offsets = [8, 0], sizes = [16, 256], strides = [1, 1]} : vector<24x256xf32> to vector<16x256xf32>
    %13 = arith.negf %12 : vector<16x256xf32>
    %14 = math.exp %13 : vector<16x256xf32>
    %cst_11 = arith.constant 1.000000e+00 : f32
    %15 = vector.broadcast %cst_11 : f32 to vector<16x256xf32>
    %16 = arith.addf %15, %14 : vector<16x256xf32>
    %17 = arith.divf %15, %16 : vector<16x256xf32>
    %18 = vector.extract_strided_slice %17 {offsets = [0, 0], sizes = [8, 256], strides = [1, 1]} : vector<16x256xf32> to vector<8x256xf32>
    %c0_12 = arith.constant 0 : index
    %c0_13 = arith.constant 0 : index
    %c0_14 = arith.constant 0 : index
    %c0_15 = arith.constant 0 : index
    %19 = vector.load %arg4[%c0_12, %c0_13, %c0_14, %c0_15] : memref<1x2x16x256xf32, #tpu.memory_space<vmem>>, vector<1x1x8x256xf32>
    %20 = vector.shape_cast %19 : vector<1x1x8x256xf32> to vector<8x256xf32>
    %21 = vector.shape_cast %18 : vector<8x256xf32> to vector<1x1x8x256xf32>
    tpu.vector_store %arg4[%c0_12, %c0_13, %c0_14, %c0_15], %21 {strides = array<i32>} : memref<1x2x16x256xf32, #tpu.memory_space<vmem>>, vector<1x1x8x256xf32>,
    %cst_16 = arith.constant 0.000000e+00 : f32
    %22 = vector.broadcast %cst_16 : f32 to vector<8x256xf32>
    %c0_17 = arith.constant 0 : index
    %c0_18 = arith.constant 0 : index
    %c8 = arith.constant 8 : index
    %c0_19 = arith.constant 0 : index
    %23 = vector.load %arg4[%c0_17, %c0_18, %c8, %c0_19] : memref<1x2x16x256xf32, #tpu.memory_space<vmem>>, vector<1x1x8x256xf32>
    %24 = vector.shape_cast %23 : vector<1x1x8x256xf32> to vector<8x256xf32>
    %25 = vector.shape_cast %22 : vector<8x256xf32> to vector<1x1x8x256xf32>
    tpu.vector_store %arg4[%c0_17, %c0_18, %c8, %c0_19], %25 {strides = array<i32>} : memref<1x2x16x256xf32, #tpu.memory_space<vmem>>, vector<1x1x8x256xf32>,
    %cst_20 = arith.constant 0.000000e+00 : f32
    %26 = vector.broadcast %cst_20 : f32 to vector<8x256xf32>
    %c0_21 = arith.constant 0 : index
    %c1_22 = arith.constant 1 : index
    %c0_23 = arith.constant 0 : index
    %c0_24 = arith.constant 0 : index
    %27 = vector.load %arg4[%c0_21, %c1_22, %c0_23, %c0_24] : memref<1x2x16x256xf32, #tpu.memory_space<vmem>>, vector<1x1x8x256xf32>
    %28 = vector.shape_cast %27 : vector<1x1x8x256xf32> to vector<8x256xf32>
    %29 = vector.shape_cast %26 : vector<8x256xf32> to vector<1x1x8x256xf32>
    tpu.vector_store %arg4[%c0_21, %c1_22, %c0_23, %c0_24], %29 {strides = array<i32>} : memref<1x2x16x256xf32, #tpu.memory_space<vmem>>, vector<1x1x8x256xf32>,
    %30 = vector.extract_strided_slice %17 {offsets = [8, 0], sizes = [8, 256], strides = [1, 1]} : vector<16x256xf32> to vector<8x256xf32>
    %c0_25 = arith.constant 0 : index
    %c1_26 = arith.constant 1 : index
    %c8_27 = arith.constant 8 : index
    %c0_28 = arith.constant 0 : index
    %31 = vector.load %arg4[%c0_25, %c1_26, %c8_27, %c0_28] : memref<1x2x16x256xf32, #tpu.memory_space<vmem>>, vector<1x1x8x256xf32>
    %32 = vector.shape_cast %31 : vector<1x1x8x256xf32> to vector<8x256xf32>
    %33 = vector.shape_cast %30 : vector<8x256xf32> to vector<1x1x8x256xf32>
    tpu.vector_store %arg4[%c0_25, %c1_26, %c8_27, %c0_28], %33 {strides = array<i32>} : memref<1x2x16x256xf32, #tpu.memory_space<vmem>>, vector<1x1x8x256xf32>,
    return
  }
  func.func @transform_0(%arg0: i32) -> (i32, i32, i32) {
    %c0_i32 = arith.constant 0 : i32
    %c0_i32_0 = arith.constant 0 : i32
    %c0_i32_1 = arith.constant 0 : i32
    return %arg0, %c0_i32, %c0_i32_0 : i32, i32, i32
  }
  func.func @transform_1(%arg0: i32) -> (i32, i32) {
    %c0_i32 = arith.constant 0 : i32
    %c0_i32_0 = arith.constant 0 : i32
    %c0_i32_1 = arith.constant 0 : i32
    return %c0_i32, %c0_i32_0 : i32, i32
  }
  func.func @transform_2(%arg0: i32) -> (i32, i32, i32, i32) {
    %c0_i32 = arith.constant 0 : i32
    %c0_i32_0 = arith.constant 0 : i32
    %c0_i32_1 = arith.constant 0 : i32
    %c0_i32_2 = arith.constant 0 : i32
    return %arg0, %c0_i32, %c0_i32_0, %c0_i32_1 : i32, i32, i32, i32
  }
  func.func @transform_3(%arg0: i32) -> (i32, i32, i32, i32) {
    %c0_i32 = arith.constant 0 : i32
    %c0_i32_0 = arith.constant 0 : i32
    %c0_i32_1 = arith.constant 0 : i32
    %c0_i32_2 = arith.constant 0 : i32
    return %arg0, %c0_i32, %c0_i32_0, %c0_i32_1 : i32, i32, i32, i32
  }
}

</mosaic_0001>

<llo_original>
// kernel: tpu_custom_call.1
$region0: #{tpu_custom_call.1}
  #allocation0 [shape = 'u32[]', space=smem, size = 0x4, offset = 0x4, fixed_abs, tag = 'smem constant byte address 0x4 - core index']
  #allocation1 [shape = 'u32[144,128]{1,0:T(1,128)}', space=vmem, size = 0x12000, scoped, tag = 'internal scratch']
  %s0 = inlined_call_operand.hbm [shape: bf16[2,32,256], index: 0, kind: input, shape index: {}]
  %s1 = inlined_call_operand.hbm [shape: bf16[24,32], index: 1, kind: input, shape index: {}]
  %s2 = inlined_call_operand.hbm [shape: f32[2,2,4,256], index: 2, kind: output, shape index: {0}]
  %s3 = inlined_call_operand.hbm [shape: f32[2,2,16,256], index: 3, kind: output, shape index: {1}]
  %4 = xla_tuple %s2, %s3
  %s5 = sld [smem:[#allocation0]]
  $region57: #{tpu_custom_call.1} parent=0
    _
  %s7 = ssub.s32 1, %s5
  %s8 = scalar_select 0, %s7, %s5
  $region1: #{tpu_custom_call.1} parent=0
    #allocation2 [shape = 'u8[32768]{0}', space=vmem, size = 0x8000, scoped, tag = 'input window, operand 0']
    #allocation3 [shape = 's32[2]{0}', space=sflag, size = 0x8, scoped, tag = 'scoped memory for tpu_custom_call.1']
    #allocation4 [shape = 's32[2]{0}', space=sflag, size = 0x8, scoped, tag = 'scoped memory for tpu_custom_call.1']
    #allocation5 [shape = 'u8[6144]{0}', space=vmem, size = 0x1800, scoped, tag = 'input window, operand 1, single buffered']
    #allocation6 [shape = 's32[1]{0}', space=sflag, size = 0x4, scoped, tag = 'scoped memory for tpu_custom_call.1']
    #allocation7 [shape = 'u8[16384]{0}', space=vmem, size = 0x4000, scoped, tag = 'output window, operand 0']
    #allocation8 [shape = 'u8[65536]{0}', space=vmem, size = 0x10000, scoped, tag = 'output window, operand 1']
    #allocation9 [shape = 's32[2]{0}', space=sflag, size = 0x8, scoped, tag = 'scoped memory for tpu_custom_call.1']
    %9 = vsyncpa [#allocation3], 0
    %s10 = scalar_lea.sflag [#allocation3], 1
    %11 = vsyncpa %s10, 0
    %12 = vsyncpa [#allocation6], 0
    %13 = vsyncpa [#allocation4], 0
    %s14 = scalar_lea.sflag [#allocation4], 1
    %15 = vsyncpa %s14, 0
    %16 = vsyncpa [#allocation9], 0
    %s17 = scalar_lea.sflag [#allocation9], 1
    %18 = vsyncpa %s17, 0
    loop: start=0, step=1, limit=4
    $region2: #{tpu_custom_call.1} parent=1 // loop_pre_header
      _
    $region3: #{tpu_custom_call.1} parent=1 // loop_header
      %s20 = sphi 0, %s24
      %p21 = scmp.ge.s32.totalorder %s20, 4
      %s30 = sphi 0, %s32
      %s33 = sphi 0, %s30
      %s34 = sphi 0, %s33
      %s50 = sphi 0, %s34
      %s54 = sphi 0, %s54
      %s56 = sphi 0, %s54
      %s57 = sphi 0, %s56
      %s71 = sphi 0, %s57
      %s77 = sphi 0, %s79
      %s80 = sphi 0, %s77
      %s81 = sphi 0, %s80
      %s97 = sphi 0, %s81
      %s103 = sphi 0, %s105
      %s106 = sphi 0, %s103
      %s107 = sphi 0, %s106
      %s123 = sphi 0, %s107
    $region4: #{tpu_custom_call.1} parent=1 // loop_header_branch
      %23 = sbr.rel (%p21) target = $region8
    $region5: #{tpu_custom_call.1} parent=1 // loop_body
      %s25 = ssub.s32 %s20, 1
      %s26 = ssub.s32 %s20, 2
      %s27 = sadd.s32 %s20, 1
      %s28 = ssub.s32 %s20, %s27
      %p29 = scmp.eq.s32.totalorder %s28, 0
      %s31 = sadd.s32 %s30, 1
      %s32 = scalar_select %p29, %s30, %s31
      %p35 = pneg %p29
      %p36 = scmp.eq.s32.totalorder %s20, 1
      %p37 = por %p35, %p36
      %p38 = scmp.ne.s32.totalorder %s30, %s33
      %p39 = scmp.eq.s32.totalorder %s20, 0
      %p40 = por %p38, %p39
      %p41 = scmp.ne.s32.totalorder %s30, %s33
      %p42 = scmp.eq.s32.totalorder %s25, 1
      %p43 = por %p41, %p42
      %p44 = scmp.ne.s32.totalorder %s33, %s34
      %p45 = scmp.eq.s32.totalorder %s25, 0
      %p46 = por %p44, %p45
      %p47 = scmp.ne.s32.totalorder %s33, %s34
      %p48 = scmp.eq.s32.totalorder %s26, 1
      %p49 = por %p47, %p48
      %p51 = scmp.ne.s32.totalorder %s34, %s50
      %p52 = scmp.eq.s32.totalorder %s26, 0
      %p53 = por %p51, %p52
      %s55 = sadd.s32 %s54, 1
      %p58 = scmp.eq.s32.totalorder %s20, 1
      %p59 = scmp.ne.s32.totalorder %s54, %s56
      %p60 = scmp.eq.s32.totalorder %s20, 0
      %p61 = por %p59, %p60
      %p62 = scmp.ne.s32.totalorder %s54, %s56
      %p63 = scmp.eq.s32.totalorder %s25, 1
      %p64 = por %p62, %p63
      %p65 = scmp.ne.s32.totalorder %s56, %s57
      %p66 = scmp.eq.s32.totalorder %s25, 0
      %p67 = por %p65, %p66
      %p68 = scmp.ne.s32.totalorder %s56, %s57
      %p69 = scmp.eq.s32.totalorder %s26, 1
      %p70 = por %p68, %p69
      %p72 = scmp.ne.s32.totalorder %s57, %s71
      %p73 = scmp.eq.s32.totalorder %s26, 0
      %p74 = por %p72, %p73
      %s75 = ssub.s32 %s20, %s27
      %p76 = scmp.eq.s32.totalorder %s75, 0
      %s78 = sadd.s32 %s77, 1
      %s79 = scalar_select %p76, %s77, %s78
      %p82 = pneg %p76
      %p83 = scmp.eq.s32.totalorder %s20, 1
      %p84 = por %p82, %p83
      %p85 = scmp.ne.s32.totalorder %s77, %s80
      %p86 = scmp.eq.s32.totalorder %s20, 0
      %p87 = por %p85, %p86
      %p88 = scmp.ne.s32.totalorder %s77, %s80
      %p89 = scmp.eq.s32.totalorder %s25, 1
      %p90 = por %p88, %p89
      %p91 = scmp.ne.s32.totalorder %s80, %s81
      %p92 = scmp.eq.s32.totalorder %s25, 0
      %p93 = por %p91, %p92
      %p94 = scmp.ne.s32.totalorder %s80, %s81
      %p95 = scmp.eq.s32.totalorder %s26, 1
      %p96 = por %p94, %p95
      %p98 = scmp.ne.s32.totalorder %s81, %s97
      %p99 = scmp.eq.s32.totalorder %s26, 0
      %p100 = por %p98, %p99
      %s101 = ssub.s32 %s20, %s27
      %p102 = scmp.eq.s32.totalorder %s101, 0
      %s104 = sadd.s32 %s103, 1
      %s105 = scalar_select %p102, %s103, %s104
      %p108 = pneg %p102
      %p109 = scmp.eq.s32.totalorder %s20, 1
      %p110 = por %p108, %p109
      %p111 = scmp.ne.s32.totalorder %s103, %s106
      %p112 = scmp.eq.s32.totalorder %s20, 0
      %p113 = por %p111, %p112
      %p114 = scmp.ne.s32.totalorder %s103, %s106
      %p115 = scmp.eq.s32.totalorder %s25, 1
      %p116 = por %p114, %p115
      %p117 = scmp.ne.s32.totalorder %s106, %s107
      %p118 = scmp.eq.s32.totalorder %s25, 0
      %p119 = por %p117, %p118
      %p120 = scmp.ne.s32.totalorder %s106, %s107
      %p121 = scmp.eq.s32.totalorder %s26, 1
      %p122 = por %p120, %p121
      %p124 = scmp.ne.s32.totalorder %s107, %s123
      %p125 = scmp.eq.s32.totalorder %s26, 0
      %p126 = por %p124, %p125
      %p127 = scmp.le.s32.totalorder 1, %s20
      %p128 = scmp.lt.s32.totalorder %s20, 3
      %p129 = pnand %p127, %p128
      %p130 = pneg %p129
      // Predicated region
      $region9: #{tpu_custom_call.1} parent=5 // pred_check
        _
      $region10: #{tpu_custom_call.1} parent=5 // pred_check_branch
        %132 = sbr.rel (%p129) target = $region12
      $region11: #{tpu_custom_call.1} parent=5 // pred_region
        %s133 = ssub.s32 %s20, 1
        // Predicated region
        $region13: #{tpu_custom_call.1} parent=11 // pred_check
          %p134 = pneg %p67
        $region14: #{tpu_custom_call.1} parent=11 // pred_check_branch
          %136 = sbr.rel (%p134) target = $region16
        $region15: #{tpu_custom_call.1} parent=11 // pred_region
          %s138 = ssub.s32 192, 192
          %139 = vsyncadd [#allocation6], %s138
          %s140 = sshll.u32 [#allocation5], 4
          %s141 = int_to_ptr.vmem [resolvable:$true] %s140
          %146 = dma.hbm_to_vmem [thread:$0]  %s1, 192, %s141, [#allocation6], 64, 64, 4
        $region16: #{tpu_custom_call.1} parent=11 // pred_fallthru
          _
      $region12: #{tpu_custom_call.1} parent=5 // pred_fallthru
        _
      %p147 = scmp.lt.s32.totalorder %s20, 2
      // Predicated region
      $region17: #{tpu_custom_call.1} parent=5 // pred_check
        %p148 = pneg %p147
      $region18: #{tpu_custom_call.1} parent=5 // pred_check_branch
        %150 = sbr.rel (%p148) target = $region20
      $region19: #{tpu_custom_call.1} parent=5 // pred_region
        // Predicated region
        $region21: #{tpu_custom_call.1} parent=19 // pred_check
          %p151 = pneg %p40
        $region22: #{tpu_custom_call.1} parent=19 // pred_check_branch
          %153 = sbr.rel (%p151) target = $region24
        $region23: #{tpu_custom_call.1} parent=19 // pred_region
          %s154 = sand.u32 %s30, 1
          %s155 = scalar_lea.sflag [#allocation3], %s154
          %s156 = sand.u32 %s30, 1
          %s157 = smul.addr %s156, 32
          %s158 = scalar_lea.vmem [#allocation2], %s157
          %s160 = ssub.s32 512, 512
          %161 = vsyncadd %s155, %s160
          %s162 = smul.addr %s20, 8
          %s163 = smul.addr %s162, 64
          %s164 = scalar_lea.hbm %s0, %s163
          %s165 = sshll.u32 %s158, 4
          %s166 = int_to_ptr.vmem [resolvable:$true] %s165
          %171 = dma.hbm_to_vmem [thread:$0]  %s164, 512, %s166, %s155, 128, 128, 8
        $region24: #{tpu_custom_call.1} parent=19 // pred_fallthru
          _
      $region20: #{tpu_custom_call.1} parent=5 // pred_fallthru
        _
      %p172 = scmp.le.s32.totalorder 1, %s20
      %p173 = scmp.lt.s32.totalorder %s20, 3
      %p174 = pnand %p172, %p173
      %p175 = pneg %p174
      // Predicated region
      $region25: #{tpu_custom_call.1} parent=5 // pred_check
        _
      $region26: #{tpu_custom_call.1} parent=5 // pred_check_branch
        %177 = sbr.rel (%p174) target = $region28
      $region27: #{tpu_custom_call.1} parent=5 // pred_region
        %s178 = ssub.s32 %s20, 1
        %s179 = sand.u32 %s33, 1
        %s180 = scalar_lea.sflag [#allocation3], %s179
        %s181 = sand.u32 %s33, 1
        %s182 = smul.addr %s181, 32
        %s183 = scalar_lea.vmem [#allocation2], %s182
        // Predicated region
        $region29: #{tpu_custom_call.1} parent=27 // pred_check
          %p184 = pneg %p46
        $region30: #{tpu_custom_call.1} parent=27 // pred_check_branch
          %186 = sbr.rel (%p184) target = $region32
        $region31: #{tpu_custom_call.1} parent=27 // pred_region
          %187 = dma.done %s180, 512
        $region32: #{tpu_custom_call.1} parent=27 // pred_fallthru
          _
        // Predicated region
        $region33: #{tpu_custom_call.1} parent=27 // pred_check
          %p188 = pneg %p67
        $region34: #{tpu_custom_call.1} parent=27 // pred_check_branch
          %190 = sbr.rel (%p188) target = $region36
        $region35: #{tpu_custom_call.1} parent=27 // pred_region
          %191 = dma.done [#allocation6], 192
        $region36: #{tpu_custom_call.1} parent=27 // pred_fallthru
          _
        %s192 = sand.u32 %s33, 1
        %s193 = scalar_lea.sflag [#allocation3], %s192
        %s194 = sand.u32 %s33, 1
        %s195 = smul.addr %s194, 32
        %s196 = scalar_lea.vmem [#allocation2], %s195
        %p197 = pneg %p46
        %p198 = pneg %p43
        %p199 = pneg %p67
        %p200 = pneg %p64
        %p201 = pneg %p93
        %p202 = pneg %p90
        %s203 = sand.u32 %s80, 1
        %s204 = scalar_lea.sflag [#allocation4], %s203
        %s205 = sand.u32 %s80, 1
        %s206 = smul.addr %s205, 16
        %s207 = scalar_lea.vmem [#allocation7], %s206
        %p208 = pneg %p119
        %p209 = pneg %p116
        %s210 = sand.u32 %s106, 1
        %s211 = scalar_lea.sflag [#allocation9], %s210
        %s212 = sand.u32 %s106, 1
        %s213 = smul.addr %s212, 64
        %s214 = scalar_lea.vmem [#allocation8], %s213
        %v216 = vld [vmem:[#allocation5] sm:$0xf]
        %v217 = vld [vmem:[#allocation5 + $0x4] sm:$0xf]
        %v218 = vld [vmem:[#allocation5 + $0x8] sm:$0xf]
        %v219 = vld [vmem:[%s183] sm:$0xff]
        %v220 = vld [vmem:[%s183 + $0x8] sm:$0xff]
        %v221 = vld [vmem:[%s183 + $0x10] sm:$0xff]
        %v222 = vld [vmem:[%s183 + $0x18] sm:$0xff]
        %v226 = vunpack.c.l.b16 %v216
        %v227 = vunpack.c.l.b16 %v217
        %v228 = vunpack.c.l.b16 %v218
        %v229 = vpack.c.b16 %v227, %v226
        %v230 = vpack.c.b16 %v228, %v228
        %v235 = vunpack.c.l.b16 %v219
        %v236 = vunpack.c.h.b16 %v219
        %v237 = vunpack.c.l.b16 %v220
        %v238 = vunpack.c.h.b16 %v220
        %v239 = vunpack.c.l.b16 %v221
        %v240 = vunpack.c.h.b16 %v221
        %v241 = vunpack.c.l.b16 %v222
        %v242 = vunpack.c.h.b16 %v222
        %v243 = vpack.c.b16 %v237, %v235
        %v244 = vpack.c.b16 %v238, %v236
        %v245 = vpack.c.b16 %v241, %v239
        %v246 = vpack.c.b16 %v242, %v240
        %vm251 = vcmask 261120
        %v253 = vsel %vm251, %v229, 0
        %v256 = vsel %vm251, %v230, 0
        %258 = vmatprep.subr.bf16.mxu0 0
        %259 = vmatpush1.bf16.msra.mxu0 0
        %260 = vmatprep.subr.bf16.mxu0 0
        %261 = vmatpush1.bf16.msra.mxu0 0
        %262 = vmatprep.subr.bf16.mxu0 0
        %263 = vmatpush1.bf16.msra.mxu0 0
        %264 = vmatprep.subr.bf16.mxu0 0
        %265 = vmatpush1.bf16.msra.mxu0 0
        %266 = vmatprep.subr.bf16.mxu0 0
        %267 = vmatpush1.bf16.msra.mxu0 0
        %268 = vmatprep.subr.bf16.mxu0 0
        %269 = vmatpush1.bf16.msra.mxu0 0
        %270 = vmatprep.subr.bf16.mxu0 %v246
        %271 = vmatpush1.bf16.msra.mxu0 %v245
        %272 = vmatprep.subr.bf16.mxu0 %v244
        %273 = vmatpush1.bf16.msra.mxu0 %v243
        %274 = vmatprep.subr.bf16.mxu0 0
        %275 = vmatpush2.bf16.msra.mxu0 0
        %276 = vmatprep.subr.bf16.mxu0 0
        %277 = vmatpush2.bf16.msra.mxu0 0
        %278 = vmatprep.subr.bf16.mxu0 0
        %279 = vmatpush2.bf16.msra.mxu0 0
        %280 = vmatprep.subr.bf16.mxu0 0
        %281 = vmatpush2.bf16.msra.mxu0 0
        %282 = vmatprep.subr.bf16.mxu0 0
        %283 = vmatpush2.bf16.msra.mxu0 0
        %284 = vmatprep.subr.bf16.mxu0 0
        %285 = vmatpush2.bf16.msra.mxu0 0
        %286 = vmatprep.subr.bf16.mxu0 0
        %287 = vmatpush2.bf16.msra.mxu0 0
        %288 = vmatprep.subr.bf16.mxu0 0
        %289 = vmatpush2.bf16.msra.mxu0 0
        %290 = vmatprep.mubr.bf16.mxu0 0
        %291 = vmatmul.mubr.bf16.gmra.mxu0 %v253
        %v292 = vpop.f32.mrf.mxu0
        %v293 = vadd.f32 0.0, %v292
        %v294 = vpop.f32.mrf.mxu0
        %v295 = vadd.f32 0.0, %v294
        %v296 = vpop.f32.mrf.mxu0
        %v297 = vadd.f32 0.0, %v296
        %v298 = vpop.f32.mrf.mxu0
        %v299 = vadd.f32 0.0, %v298
        %300 = vmatprep.mubr.bf16.mxu0 0
        %301 = vmatmul.mubr.bf16.gmra.mxu0 %v256
        %v302 = vpop.f32.mrf.mxu0
        %v303 = vadd.f32 0.0, %v302
        %v304 = vpop.f32.mrf.mxu0
        %v305 = vadd.f32 0.0, %v304
        %v306 = vpop.f32.mrf.mxu0
        %v307 = vpop.f32.mrf.mxu0
        %308 = vdwg.mxu0
        %v311 = vcombine.low %v293, %v295
        %313 = vst [vmem:[%s207] sm:$0xff] %v311
        %v314 = vcombine.high %v293, %v295
        %s316 = scalar_lea.vmem %s207, 8 [#allocation7]
        %317 = vst [vmem:[%s316] sm:$0xff] %v314
        %v318 = vxor.u32 %v297, 2147483648
        %v319 = vxor.u32 %v299, 2147483648
        %v320 = vxor.u32 %v303, 2147483648
        %v321 = vxor.u32 %v305, 2147483648
        %v322 = vmul.f32 %v318, 1.442695
        %v323 = vpow.pop %v322
        %v324 = vmul.f32 %v319, 1.442695
        %v325 = vpow.pop %v324
        %v326 = vmul.f32 %v320, 1.442695
        %v327 = vpow.pop %v326
        %v328 = vmul.f32 %v321, 1.442695
        %v329 = vpow.pop %v328
        %v330 = vadd.f32 %v323, 1.0
        %v331 = vadd.f32 %v325, 1.0
        %v332 = vadd.f32 %v327, 1.0
        %v333 = vadd.f32 %v329, 1.0
        %v334 = vrcp.pop %v330
        %v335 = vmul.f32 1.0, %v334
        %v336 = vrcp.pop %v331
        %v337 = vmul.f32 1.0, %v336
        %v338 = vrcp.pop %v332
        %v339 = vmul.f32 1.0, %v338
        %v340 = vrcp.pop %v333
        %v341 = vmul.f32 1.0, %v340
        %342 = vst [vmem:[%s214] sm:$0xff] %v335
        %343 = vst [vmem:[%s214 + $0x8] sm:$0xff] %v337
        %344 = vst [vmem:[%s214 + $0x10] sm:$0xff] 0.0
        %345 = vst [vmem:[%s214 + $0x18] sm:$0xff] 0.0
        %s346 = scalar_lea.vmem %s214, 32 [#allocation8]
        %347 = vst [vmem:[%s346] sm:$0xff] 0.0
        %348 = vst [vmem:[%s346 + $0x8] sm:$0xff] 0.0
        %349 = vst [vmem:[%s346 + $0x10] sm:$0xff] %v339
        %350 = vst [vmem:[%s346 + $0x18] sm:$0xff] %v341
        %s351 = sand.u32 %s80, 1
        %s352 = scalar_lea.sflag [#allocation4], %s351
        %s353 = sand.u32 %s80, 1
        %s354 = smul.addr %s353, 16
        %s355 = scalar_lea.vmem [#allocation7], %s354
        %s356 = sand.u32 %s106, 1
        %s357 = scalar_lea.sflag [#allocation9], %s356
        %s358 = sand.u32 %s106, 1
        %s359 = smul.addr %s358, 64
        %s360 = scalar_lea.vmem [#allocation8], %s359
        // Predicated region
        $region37: #{tpu_custom_call.1} parent=27 // pred_check
          %p361 = pneg %p90
        $region38: #{tpu_custom_call.1} parent=27 // pred_check_branch
          %363 = sbr.rel (%p361) target = $region40
        $region39: #{tpu_custom_call.1} parent=27 // pred_region
          %s365 = ssub.s32 256, 256
          %366 = vsyncadd %s352, %s365
          %s367 = smul.addr %s25, 4
          %s368 = smul.addr %s367, 64
          %s369 = scalar_lea.hbm %s2, %s368
          %s370 = sshll.u32 %s355, 4
          %s371 = int_to_ptr.vmem [resolvable:$true] %s370
          %376 = dma.vmem_to_hbm [thread:$0]  %s371, 256, %s369, %s352, 128, 128, 8
        $region40: #{tpu_custom_call.1} parent=27 // pred_fallthru
          _
        // Predicated region
        $region41: #{tpu_custom_call.1} parent=27 // pred_check
          %p377 = pneg %p116
        $region42: #{tpu_custom_call.1} parent=27 // pred_check_branch
          %379 = sbr.rel (%p377) target = $region44
        $region43: #{tpu_custom_call.1} parent=27 // pred_region
          %s381 = ssub.s32 1024, 1024
          %382 = vsyncadd %s357, %s381
          %s383 = smul.addr %s25, 8
          %s384 = smul.addr %s383, 128
          %s385 = scalar_lea.hbm %s3, %s384
          %s386 = sshll.u32 %s360, 4
          %s387 = int_to_ptr.vmem [resolvable:$true] %s386
          %392 = dma.vmem_to_hbm [thread:$0]  %s387, 1024, %s385, %s357, 256, 256, 16
        $region44: #{tpu_custom_call.1} parent=27 // pred_fallthru
          _
      $region28: #{tpu_custom_call.1} parent=5 // pred_fallthru
        _
      %p393 = scmp.le.s32.totalorder 2, %s20
      // Predicated region
      $region45: #{tpu_custom_call.1} parent=5 // pred_check
        %p394 = pneg %p393
      $region46: #{tpu_custom_call.1} parent=5 // pred_check_branch
        %396 = sbr.rel (%p394) target = $region48
      $region47: #{tpu_custom_call.1} parent=5 // pred_region
        %s397 = ssub.s32 %s20, 2
        // Predicated region
        $region49: #{tpu_custom_call.1} parent=47 // pred_check
          %p398 = pneg %p96
        $region50: #{tpu_custom_call.1} parent=47 // pred_check_branch
          %400 = sbr.rel (%p398) target = $region52
        $region51: #{tpu_custom_call.1} parent=47 // pred_region
          %s401 = sand.u32 %s81, 1
          %s402 = scalar_lea.sflag [#allocation4], %s401
          %s403 = sand.u32 %s81, 1
          %s404 = smul.addr %s403, 16
          %s405 = scalar_lea.vmem [#allocation7], %s404
          %406 = dma.done %s402, 256
        $region52: #{tpu_custom_call.1} parent=47 // pred_fallthru
          _
        // Predicated region
        $region53: #{tpu_custom_call.1} parent=47 // pred_check
          %p407 = pneg %p122
        $region54: #{tpu_custom_call.1} parent=47 // pred_check_branch
          %409 = sbr.rel (%p407) target = $region56
        $region55: #{tpu_custom_call.1} parent=47 // pred_region
          %s410 = sand.u32 %s107, 1
          %s411 = scalar_lea.sflag [#allocation9], %s410
          %s412 = sand.u32 %s107, 1
          %s413 = smul.addr %s412, 64
          %s414 = scalar_lea.vmem [#allocation8], %s413
          %415 = dma.done %s411, 1024
        $region56: #{tpu_custom_call.1} parent=47 // pred_fallthru
          _
      $region48: #{tpu_custom_call.1} parent=5 // pred_fallthru
        _
    $region6: #{tpu_custom_call.1} parent=1 // loop_footer
      %s24 = sadd.s32 1, %s20
    $region7: #{tpu_custom_call.1} parent=1 // loop_footer_branch
      %19 = sbr.rel target = $region3
    $region8: #{tpu_custom_call.1} parent=1 // loop_exit
      _
    %416 = vsyncpa [#allocation3], 1
    %s417 = scalar_lea.sflag [#allocation3], 1
    %418 = vsyncpa %s417, 1
    %419 = vsyncpa [#allocation6], 1
    %420 = vsyncpa [#allocation4], 1
    %s421 = scalar_lea.sflag [#allocation4], 1
    %422 = vsyncpa %s421, 1
    %423 = vsyncpa [#allocation9], 1
    %s424 = scalar_lea.sflag [#allocation9], 1
    %425 = vsyncpa %s424, 1

</llo_original>
